<compile_context>
chip_gen: v7x
topology: tpu7x:2x2x1
jax: 0.10.0
libtpu: 0.0.40
codegen_flags: <defaults>
</compile_context>

<pallas_src>
import jax
import jax.numpy as jnp
from jax.experimental import pallas as pl
from jax.experimental.pallas import tpu as pltpu

LANE = 128           # TPU lane width: hidden/output feature dims are padded to this.
MAX_BATCH_TILE = 2048  # big tiles amortize the ~0.35 us per-grid-step overhead.


def _round_up(n, m):
    return ((n + m - 1) // m) * m


def _pick_batch_tile(batch):
    """Batch-tile policy:
       - tiny batches (<=8): one tile (can't split below the 8-row sublane).
       - otherwise: split into >=2 tiles (keeps both v7x TensorCores busy) but
         never smaller than batch/2 and never larger than MAX_BATCH_TILE."""
    if batch <= 8:
        return batch
    half = _round_up(pl.cdiv(batch, 2), 8)
    return min(half, MAX_BATCH_TILE)


def simple_nn_kernel(x_ref, w1_ref, b1_ref, w2_ref, b2_ref, o_ref):
    # Layer 1: x @ W1 + b1, ReLU. MXU matmul with f32 accumulation.
    x = x_ref[...]
    h = jnp.dot(x, w1_ref[...], preferred_element_type=jnp.float32)
    h = jnp.maximum(h + b1_ref[...].astype(jnp.float32), 0.0)
    # Layer 2: h @ W2 + b2, sigmoid, scale to [1, 5]. Cast h back to the weight
    # dtype so bf16 weights keep the second matmul on the bf16 MXU path.
    h = h.astype(w2_ref.dtype)
    y = jnp.dot(h, w2_ref[...], preferred_element_type=jnp.float32)
    y = y + b2_ref[...].astype(jnp.float32)
    y = jax.nn.sigmoid(y) * 4.0 + 1.0
    o_ref[...] = y.astype(o_ref.dtype)  # lane-dense (padded) store


def init_params(key, input_size, hidden_size, output_size, dtype=jnp.float32):
    """PyTorch nn.Linear-style init (uniform +/- 1/sqrt(fan_in)); weights stored
    transposed vs PyTorch ([in, out]) so the kernel computes x @ W."""
    k1, k2, k3, k4 = jax.random.split(key, 4)
    bound1 = 1.0 / jnp.sqrt(input_size)
    bound2 = 1.0 / jnp.sqrt(hidden_size)
    w1 = jax.random.uniform(k1, (input_size, hidden_size), dtype, -bound1, bound1)
    b1 = jax.random.uniform(k2, (1, hidden_size), dtype, -bound1, bound1)
    w2 = jax.random.uniform(k3, (hidden_size, output_size), dtype, -bound2, bound2)
    b2 = jax.random.uniform(k4, (1, output_size), dtype, -bound2, bound2)
    return w1, b1, w2, b2


def pad_params_for_tpu(w1, b1, w2, b2, lane=LANE):
    """One-time (init-time) lane padding of the hidden and output feature dims.
    Zero padding keeps the math identical: padded hidden units are ReLU(0)=0 and
    multiply zero rows of W2; padded output lanes are sliced off by the wrapper."""
    in_size, hid = w1.shape
    out = w2.shape[1]
    hid_p = _round_up(hid, lane)
    out_p = _round_up(out, lane)
    w1p = jnp.zeros((in_size, hid_p), w1.dtype).at[:, :hid].set(w1)
    b1p = jnp.zeros((1, hid_p), b1.dtype).at[:, :hid].set(b1)
    w2p = jnp.zeros((hid_p, out_p), w2.dtype).at[:hid, :out].set(w2)
    b2p = jnp.zeros((1, out_p), b2.dtype).at[:, :out].set(b2)
    return w1p, b1p, w2p, b2p


def simple_nn_forward(x, w1p, b1p, w2p, b2p, output_size=None,
                      return_padded=False, out_dtype=None):
    """Forward pass. Parameters must already be lane-padded (pad_params_for_tpu).

    x: [B, in], w1p: [in, hid_pad], b1p: [1, hid_pad], w2p: [hid_pad, out_pad],
    b2p: [1, out_pad].  Returns [B, output_size] (or the [B, out_pad] slab if
    return_padded=True, which skips the extra XLA slice pass)."""
    batch, input_size = x.shape
    hid_pad = w1p.shape[1]
    out_pad = w2p.shape[1]
    if out_dtype is None:
        out_dtype = x.dtype

    tb = _pick_batch_tile(batch)
    grid = (pl.cdiv(batch, tb),)

    flops = 2 * batch * (input_size * hid_pad + hid_pad * out_pad)
    bytes_accessed = (
        x.size * x.dtype.itemsize
        + w1p.size * w1p.dtype.itemsize
        + b1p.size * b1p.dtype.itemsize
        + w2p.size * w2p.dtype.itemsize
        + b2p.size * b2p.dtype.itemsize
        + batch * out_pad * jnp.dtype(out_dtype).itemsize
    )

    out_padded = pl.pallas_call(
        simple_nn_kernel,
        out_shape=jax.ShapeDtypeStruct((batch, out_pad), out_dtype),
        grid=grid,
        in_specs=[
            # Batch tile streams through the pipeline.
            pl.BlockSpec((tb, input_size), lambda i: (i, 0)),
            # Weights/biases: constant block index -> DMA'd once, VMEM-resident.
            pl.BlockSpec((input_size, hid_pad), lambda i: (0, 0)),
            pl.BlockSpec((1, hid_pad), lambda i: (0, 0)),
            pl.BlockSpec((hid_pad, out_pad), lambda i: (0, 0)),
            pl.BlockSpec((1, out_pad), lambda i: (0, 0)),
        ],
        out_specs=pl.BlockSpec((tb, out_pad), lambda i: (i, 0)),
        compiler_params=pltpu.CompilerParams(
            dimension_semantics=("parallel",),  # batch axis shards across TCs (v7x)
        ),
        cost_estimate=pl.CostEstimate(
            flops=flops,
            transcendentals=batch * out_pad,
            bytes_accessed=bytes_accessed,
        ),
    )(x, w1p, b1p, w2p, b2p)

    if return_padded or output_size is None:
        return out_padded
    return out_padded[:, :output_size]


def _reference(x, w1, b1, w2, b2):
    return jax.nn.sigmoid(jnp.maximum(x @ w1 + b1, 0.0) @ w2 + b2) * 4.0 + 1.0


if __name__ == "__main__":
    # Small shapes consistent with the module: batch=8, input=16, hidden=32, output=8.
    batch, input_size, hidden_size, output_size = 8, 16, 32, 8

    key = jax.random.PRNGKey(0)
    kx, kp = jax.random.split(key)
    x = jax.random.normal(kx, (batch, input_size), jnp.float32)
    w1, b1, w2, b2 = init_params(kp, input_size, hidden_size, output_size)
    ref = _reference(x, w1, b1, w2, b2)

    # Pad once at init (not per forward call).
    w1p, b1p, w2p, b2p = pad_params_for_tpu(w1, b1, w2, b2)

    # --- f32 path: exact vs reference ---
    out_f32 = simple_nn_forward(x, w1p, b1p, w2p, b2p, output_size=output_size)
    jax.block_until_ready(out_f32)
    assert out_f32.shape == (batch, output_size)
    assert jnp.allclose(out_f32, ref, atol=1e-5, rtol=1e-5), "f32 mismatch vs reference"

    # --- bf16 path: MXU-native dtype on v5e/v6e/v7x (looser tolerance expected) ---
    pbf16 = tuple(p.astype(jnp.bfloat16) for p in (w1p, b1p, w2p, b2p))
    out_bf16 = simple_nn_forward(x.astype(jnp.bfloat16), *pbf16, output_size=output_size)
    jax.block_until_ready(out_bf16)
    assert out_bf16.dtype == jnp.bfloat16
    assert jnp.allclose(out_bf16.astype(jnp.float32), ref, atol=5e-2, rtol=5e-2), \
        "bf16 mismatch vs reference"

    # --- larger batch: exercises the >=2-tile grid (megacore) and a ragged last tile ---
    xb = jax.random.normal(jax.random.PRNGKey(1), (3000, input_size), jnp.float32)
    refb = _reference(xb, w1, b1, w2, b2)
    outb = simple_nn_forward(xb, w1p, b1p, w2p, b2p, output_size=output_size)
    jax.block_until_ready(outb)
    assert outb.shape == (3000, output_size)
    assert jnp.allclose(outb, refb, atol=1e-5, rtol=1e-5), "large-batch mismatch vs reference"

    print("KERNEL_OK")
</pallas_src>

<mosaic_0001>
module attributes {stable_mosaic.version = 11 : i64} {
  func.func @simple_nn_kernel(%arg0: i32, %arg1: memref<8x16xf32, #tpu.memory_space<vmem>>, %arg2: memref<16x128xf32, #tpu.memory_space<vmem>>, %arg3: memref<1x128xf32, #tpu.memory_space<vmem>>, %arg4: memref<128x128xf32, #tpu.memory_space<vmem>>, %arg5: memref<1x128xf32, #tpu.memory_space<vmem>>, %arg6: memref<8x128xf32, #tpu.memory_space<vmem>>) attributes {dimension_semantics = [#tpu.dimension_semantics<parallel>], iteration_bounds = array<i64: 1>, scalar_prefetch = 0 : i64, scratch_operands = 0 : i64, tpu.core_type = #tpu.core_type<tc>, window_params = [{transform_indices = @transform_0, window_bounds = array<i64: 8, 16>}, {pipeline_mode = #tpu.pipeline_mode<synchronous>, transform_indices = @transform_1, window_bounds = array<i64: 16, 128>}, {pipeline_mode = #tpu.pipeline_mode<synchronous>, transform_indices = @transform_2, window_bounds = array<i64: 1, 128>}, {pipeline_mode = #tpu.pipeline_mode<synchronous>, transform_indices = @transform_3, window_bounds = array<i64: 128, 128>}, {pipeline_mode = #tpu.pipeline_mode<synchronous>, transform_indices = @transform_4, window_bounds = array<i64: 1, 128>}, {transform_indices = @transform_5, window_bounds = array<i64: 8, 128>}]} {
    %c0 = arith.constant 0 : index
    %c0_0 = arith.constant 0 : index
    %0 = vector.load %arg1[%c0, %c0_0] : memref<8x16xf32, #tpu.memory_space<vmem>>, vector<8x16xf32>
    %c0_1 = arith.constant 0 : index
    %c0_2 = arith.constant 0 : index
    %1 = vector.load %arg2[%c0_1, %c0_2] : memref<16x128xf32, #tpu.memory_space<vmem>>, vector<16x128xf32>
    %cst = arith.constant dense<0.000000e+00> : vector<8x128xf32>
    %2 = tpu.matmul %0, %1, %cst {dimension_numbers = #tpu.dot_dimension_numbers<[1], [0], [0], [1], [0, 0, 1, 1], [], []>} : vector<8x16xf32>, vector<16x128xf32>, vector<8x128xf32> -> vector<8x128xf32>
    %c0_3 = arith.constant 0 : index
    %c0_4 = arith.constant 0 : index
    %3 = vector.load %arg3[%c0_3, %c0_4] : memref<1x128xf32, #tpu.memory_space<vmem>>, vector<1x128xf32>
    %4 = vector.broadcast %3 : vector<1x128xf32> to vector<8x128xf32>
    %5 = arith.addf %2, %4 : vector<8x128xf32>
    %cst_5 = arith.constant 0.000000e+00 : f32
    %6 = vector.broadcast %cst_5 : f32 to vector<8x128xf32>
    %7 = arith.maximumf %5, %6 : vector<8x128xf32>
    %c0_6 = arith.constant 0 : index
    %c0_7 = arith.constant 0 : index
    %8 = vector.load %arg4[%c0_6, %c0_7] : memref<128x128xf32, #tpu.memory_space<vmem>>, vector<128x128xf32>
    %cst_8 = arith.constant dense<0.000000e+00> : vector<8x128xf32>
    %9 = tpu.matmul %7, %8, %cst_8 {dimension_numbers = #tpu.dot_dimension_numbers<[1], [0], [0], [1], [0, 0, 1, 1], [], []>} : vector<8x128xf32>, vector<128x128xf32>, vector<8x128xf32> -> vector<8x128xf32>
    %c0_9 = arith.constant 0 : index
    %c0_10 = arith.constant 0 : index
    %10 = vector.load %arg5[%c0_9, %c0_10] : memref<1x128xf32, #tpu.memory_space<vmem>>, vector<1x128xf32>
    %11 = vector.broadcast %10 : vector<1x128xf32> to vector<8x128xf32>
    %12 = arith.addf %9, %11 : vector<8x128xf32>
    %13 = arith.negf %12 : vector<8x128xf32>
    %14 = math.exp %13 : vector<8x128xf32>
    %cst_11 = arith.constant 1.000000e+00 : f32
    %15 = vector.broadcast %cst_11 : f32 to vector<8x128xf32>
    %16 = arith.addf %15, %14 : vector<8x128xf32>
    %17 = arith.divf %15, %16 : vector<8x128xf32>
    %cst_12 = arith.constant 4.000000e+00 : f32
    %18 = vector.broadcast %cst_12 : f32 to vector<8x128xf32>
    %19 = arith.mulf %17, %18 : vector<8x128xf32>
    %cst_13 = arith.constant 1.000000e+00 : f32
    %20 = vector.broadcast %cst_13 : f32 to vector<8x128xf32>
    %21 = arith.addf %19, %20 : vector<8x128xf32>
    %c0_14 = arith.constant 0 : index
    %c0_15 = arith.constant 0 : index
    %22 = vector.load %arg6[%c0_14, %c0_15] : memref<8x128xf32, #tpu.memory_space<vmem>>, vector<8x128xf32>
    tpu.vector_store %arg6[%c0_14, %c0_15], %21 {strides = array<i32>} : memref<8x128xf32, #tpu.memory_space<vmem>>, vector<8x128xf32>,
    return
  }
  func.func @transform_0(%arg0: i32) -> (i32, i32) {
    %c0_i32 = arith.constant 0 : i32
    %c0_i32_0 = arith.constant 0 : i32
    return %arg0, %c0_i32 : i32, i32
  }
  func.func @transform_1(%arg0: i32) -> (i32, i32) {
    %c0_i32 = arith.constant 0 : i32
    %c0_i32_0 = arith.constant 0 : i32
    %c0_i32_1 = arith.constant 0 : i32
    return %c0_i32, %c0_i32_0 : i32, i32
  }
  func.func @transform_2(%arg0: i32) -> (i32, i32) {
    %c0_i32 = arith.constant 0 : i32
    %c0_i32_0 = arith.constant 0 : i32
    %c0_i32_1 = arith.constant 0 : i32
    return %c0_i32, %c0_i32_0 : i32, i32
  }
  func.func @transform_3(%arg0: i32) -> (i32, i32) {
    %c0_i32 = arith.constant 0 : i32
    %c0_i32_0 = arith.constant 0 : i32
    %c0_i32_1 = arith.constant 0 : i32
    return %c0_i32, %c0_i32_0 : i32, i32
  }
  func.func @transform_4(%arg0: i32) -> (i32, i32) {
    %c0_i32 = arith.constant 0 : i32
    %c0_i32_0 = arith.constant 0 : i32
    %c0_i32_1 = arith.constant 0 : i32
    return %c0_i32, %c0_i32_0 : i32, i32
  }
  func.func @transform_5(%arg0: i32) -> (i32, i32) {
    %c0_i32 = arith.constant 0 : i32
    %c0_i32_0 = arith.constant 0 : i32
    return %arg0, %c0_i32 : i32, i32
  }
}

</mosaic_0001>

<llo_original>
// kernel: tpu_custom_call.1
$region0: #{tpu_custom_call.1}
  #allocation0 [shape = 'u32[]', space=smem, size = 0x4, offset = 0x4, fixed_abs, tag = 'smem constant byte address 0x4 - core index']
  #allocation1 [shape = 'u32[144,128]{1,0:T(1,128)}', space=vmem, size = 0x12000, scoped, tag = 'internal scratch']
  %s0 = inlined_call_operand.hbm [shape: f32[8,16], index: 0, kind: input, shape index: {}]
  %s1 = inlined_call_operand.hbm [shape: f32[16,128], index: 1, kind: input, shape index: {}]
  %s2 = inlined_call_operand.vmem [shape: f32[1,128], index: 2, kind: input, shape index: {}]
  %s3 = inlined_call_operand.hbm [shape: f32[128,128], index: 3, kind: input, shape index: {}]
  %s4 = inlined_call_operand.vmem [shape: f32[1,128], index: 4, kind: input, shape index: {}]
  %s5 = inlined_call_operand.hbm [shape: f32[8,128], index: 5, kind: output, shape index: {}]
  %s6 = sld [smem:[#allocation0]]
  $region42: #{tpu_custom_call.1} parent=0
    _
  %s8 = ssub.s32 1, %s6
  %s9 = scalar_select 0, %s8, %s6
  $region1: #{tpu_custom_call.1} parent=0
    #allocation2 [shape = 'u8[4096]{0}', space=vmem, size = 0x1000, scoped, tag = 'input window, operand 0, single buffered']
    #allocation3 [shape = 's32[1]{0}', space=sflag, size = 0x4, scoped, tag = 'scoped memory for tpu_custom_call.1']
    #allocation4 [shape = 's32[1]{0}', space=sflag, size = 0x4, scoped, tag = 'scoped memory for tpu_custom_call.1']
    #allocation5 [shape = 'u8[8192]{0}', space=vmem, size = 0x2000, scoped, tag = 'input window, operand 1, single buffered']
    #allocation6 [shape = 's32[1]{0}', space=sflag, size = 0x4, scoped, tag = 'scoped memory for tpu_custom_call.1']
    #allocation7 [shape = 'u8[65536]{0}', space=vmem, size = 0x10000, scoped, tag = 'input window, operand 3, single buffered']
    #allocation8 [shape = 'u8[4096]{0}', space=vmem, size = 0x1000, scoped, tag = 'output window, operand 0, single buffered']
    %10 = vsyncpa [#allocation3], 0
    %11 = vsyncpa [#allocation6], 0
    %12 = vsyncpa [#allocation4], 0
    // Predicated region
    $region2: #{tpu_custom_call.1} parent=1 // pred_check
      _
    $region3: #{tpu_custom_call.1} parent=1 // pred_check_branch
      %14 = sbr.rel (0) target = $region5
    $region4: #{tpu_custom_call.1} parent=1 // pred_region
      %s16 = ssub.s32 128, 128
      %17 = vsyncadd [#allocation3], %s16
      %s19 = sshll.u32 [#allocation2], 4
      %s20 = int_to_ptr.vmem [resolvable:$true] %s19
      %22 = dma.hbm_to_vmem [thread:$0]  %s0, 128, %s20, [#allocation3]
    $region5: #{tpu_custom_call.1} parent=1 // pred_fallthru
      _
    // Predicated region
    $region6: #{tpu_custom_call.1} parent=1 // pred_check
      _
    $region7: #{tpu_custom_call.1} parent=1 // pred_check_branch
      %24 = sbr.rel (0) target = $region9
    $region8: #{tpu_custom_call.1} parent=1 // pred_region
      %s26 = ssub.s32 256, 256
      %27 = vsyncadd [#allocation6], %s26
      %s28 = sshll.u32 [#allocation5], 4
      %s29 = int_to_ptr.vmem [resolvable:$true] %s28
      %34 = dma.hbm_to_vmem [thread:$0]  %s1, 256, %s29, [#allocation6], 128, 128, 8
    $region9: #{tpu_custom_call.1} parent=1 // pred_fallthru
      _
    // Predicated region
    $region10: #{tpu_custom_call.1} parent=1 // pred_check
      _
    $region11: #{tpu_custom_call.1} parent=1 // pred_check_branch
      %36 = sbr.rel (0) target = $region13
    $region12: #{tpu_custom_call.1} parent=1 // pred_region
      _
    $region13: #{tpu_custom_call.1} parent=1 // pred_fallthru
      _
    // Predicated region
    $region14: #{tpu_custom_call.1} parent=1 // pred_check
      _
    $region15: #{tpu_custom_call.1} parent=1 // pred_check_branch
      %38 = sbr.rel (0) target = $region17
    $region16: #{tpu_custom_call.1} parent=1 // pred_region
      %s40 = ssub.s32 2048, 2048
      %41 = vsyncadd [#allocation6], %s40
      %s42 = sshll.u32 [#allocation7], 4
      %s43 = int_to_ptr.vmem [resolvable:$true] %s42
      %48 = dma.hbm_to_vmem [thread:$0]  %s3, 2048, %s43, [#allocation6], 128, 128, 8
    $region17: #{tpu_custom_call.1} parent=1 // pred_fallthru
      _
    // Predicated region
    $region18: #{tpu_custom_call.1} parent=1 // pred_check
      _
    $region19: #{tpu_custom_call.1} parent=1 // pred_check_branch
      %50 = sbr.rel (0) target = $region21
    $region20: #{tpu_custom_call.1} parent=1 // pred_region
      _
    $region21: #{tpu_custom_call.1} parent=1 // pred_fallthru
      _
    // Predicated region
    $region22: #{tpu_custom_call.1} parent=1 // pred_check
      _
    $region23: #{tpu_custom_call.1} parent=1 // pred_check_branch
      %52 = sbr.rel (0) target = $region25
    $region24: #{tpu_custom_call.1} parent=1 // pred_region
      %53 = dma.done [#allocation3], 128
    $region25: #{tpu_custom_call.1} parent=1 // pred_fallthru
      _
    // Predicated region
    $region26: #{tpu_custom_call.1} parent=1 // pred_check
      _
    $region27: #{tpu_custom_call.1} parent=1 // pred_check_branch
      %55 = sbr.rel (0) target = $region29
    $region28: #{tpu_custom_call.1} parent=1 // pred_region
      %56 = dma.done [#allocation6], 256
    $region29: #{tpu_custom_call.1} parent=1 // pred_fallthru
      _
    // Predicated region
    $region30: #{tpu_custom_call.1} parent=1 // pred_check
      _
    $region31: #{tpu_custom_call.1} parent=1 // pred_check_branch
      %58 = sbr.rel (0) target = $region33
    $region32: #{tpu_custom_call.1} parent=1 // pred_region
      %59 = dma.done [#allocation6], 2048
    $region33: #{tpu_custom_call.1} parent=1 // pred_fallthru
      _
    %v60 = vld [vmem:[#allocation2] sm:$0xff]
    %v61 = vld [vmem:[#allocation5] sm:$0xff]
    %v62 = vld [vmem:[#allocation5 + $0x8] sm:$0xff]
    %v63 = vld [vmem:[%s2] sm:$0x1]
    %v65 = vlaneseq
    %v66 = vshrl.u32 %v65, 7
    %v67 = vsub.s32 0, %v66
    %v68 = vrot.slane %v63, %v67
    %vm70 = vcmask 130048
    %v72 = vsel %vm70, %v60, 0
    %74 = vmatprep.subr.mxu0 0.0
    %75 = vmatpush1.msra.mxu0 %v61
    %76 = vmatprep.subr.mxu0 0.0
    %77 = vmatpush1.msra.mxu0 %v62
    %78 = vmatprep.subr.mxu0 0.0
    %79 = vmatpush1.msra.mxu0 0.0
    %80 = vmatprep.subr.mxu0 0.0
    %81 = vmatpush1.msra.mxu0 0.0
    %82 = vmatprep.subr.mxu0 0.0
    %83 = vmatpush1.msra.mxu0 0.0
    %84 = vmatprep.subr.mxu0 0.0
    %85 = vmatpush1.msra.mxu0 0.0
    %86 = vmatprep.subr.mxu0 0.0
    %87 = vmatpush1.msra.mxu0 0.0
    %88 = vmatprep.subr.mxu0 0.0
    %89 = vmatpush1.msra.mxu0 0.0
    %90 = vmatprep.subr.mxu0 0.0
    %91 = vmatpush1.msra.mxu0 0.0
    %92 = vmatprep.subr.mxu0 0.0
    %93 = vmatpush1.msra.mxu0 0.0
    %94 = vmatprep.subr.mxu0 0.0
    %95 = vmatpush1.msra.mxu0 0.0
    %96 = vmatprep.subr.mxu0 0.0
    %97 = vmatpush1.msra.mxu0 0.0
    %98 = vmatprep.subr.mxu0 0.0
    %99 = vmatpush1.msra.mxu0 0.0
    %100 = vmatprep.subr.mxu0 0.0
    %101 = vmatpush1.msra.mxu0 0.0
    %102 = vmatprep.subr.mxu0 0.0
    %103 = vmatpush1.msra.mxu0 0.0
    %104 = vmatprep.subr.mxu0 0.0
    %105 = vmatpush1.msra.mxu0 0.0
    %106 = vmatprep.subr.mxu0 0.0
    %107 = vmatpush1.msra.mxu0 0.0
    %108 = vmatprep.subr.mxu0 0.0
    %109 = vmatpush1.msra.mxu0 0.0
    %110 = vmatprep.subr.mxu0 0.0
    %111 = vmatpush1.msra.mxu0 0.0
    %112 = vmatprep.subr.mxu0 0.0
    %113 = vmatpush1.msra.mxu0 0.0
    %114 = vmatprep.subr.mxu0 0.0
    %115 = vmatpush1.msra.mxu0 0.0
    %116 = vmatprep.subr.mxu0 0.0
    %117 = vmatpush1.msra.mxu0 0.0
    %118 = vmatprep.subr.mxu0 0.0
    %119 = vmatpush1.msra.mxu0 0.0
    %120 = vmatprep.subr.mxu0 0.0
    %121 = vmatpush1.msra.mxu0 0.0
    %122 = vmatprep.subr.mxu0 0.0
    %123 = vmatpush1.msra.mxu0 0.0
    %124 = vmatprep.subr.mxu0 0.0
    %125 = vmatpush1.msra.mxu0 0.0
    %126 = vmatprep.subr.mxu0 0.0
    %127 = vmatpush1.msra.mxu0 0.0
    %128 = vmatprep.subr.mxu0 0.0
    %129 = vmatpush1.msra.mxu0 0.0
    %130 = vmatprep.subr.mxu0 0.0
    %131 = vmatpush1.msra.mxu0 0.0
    %132 = vmatprep.subr.mxu0 0.0
    %133 = vmatpush1.msra.mxu0 0.0
    %134 = vmatprep.subr.mxu0 0.0
    %135 = vmatpush1.msra.mxu0 0.0
    %136 = vmatprep.subr.mxu0 0.0
    %137 = vmatpush1.msra.mxu0 0.0
    %138 = vmatprep.mubr.f32.mxu0 0.0
    %139 = vmatmul.mubr.f32.gmra.mrb[0].mxu0 %v72
    %v140 = vpop.f32.mrb[0].mxu0
    %v141 = vadd.f32 %v68, %v140
    %v142 = vpop.f32.mrb[0].mxu0
    %143 = vdwg.mxu0
    %v144 = vmax.f32 %v141, 0.0
    %v145 = vld [vmem:[#allocation7] sm:$0xff]
    %v146 = vld [vmem:[#allocation7 + $0x8] sm:$0xff]
    %v147 = vld [vmem:[#allocation7 + $0x10] sm:$0xff]
    %v148 = vld [vmem:[#allocation7 + $0x18] sm:$0xff]
    %v149 = vld [vmem:[#allocation7 + $0x20] sm:$0xff]
    %v150 = vld [vmem:[#allocation7 + $0x28] sm:$0xff]
    %v151 = vld [vmem:[#allocation7 + $0x30] sm:$0xff]
    %v152 = vld [vmem:[#allocation7 + $0x38] sm:$0xff]
    %v153 = vld [vmem:[#allocation7 + $0x40] sm:$0xff]
    %v154 = vld [vmem:[#allocation7 + $0x48] sm:$0xff]
    %v155 = vld [vmem:[#allocation7 + $0x50] sm:$0xff]
    %v156 = vld [vmem:[#allocation7 + $0x58] sm:$0xff]
    %v157 = vld [vmem:[#allocation7 + $0x60] sm:$0xff]
    %v158 = vld [vmem:[#allocation7 + $0x68] sm:$0xff]
    %v159 = vld [vmem:[#allocation7 + $0x70] sm:$0xff]
    %v160 = vld [vmem:[#allocation7 + $0x78] sm:$0xff]
    %v161 = vld [vmem:[%s4] sm:$0x1]
    %v163 = vlaneseq
    %v164 = vshrl.u32 %v163, 7
    %v165 = vsub.s32 0, %v164
    %v166 = vrot.slane %v161, %v165
    %168 = vmatprep.subr.mxu0 0.0
    %169 = vmatpush1.msra.mxu0 %v145
    %170 = vmatprep.subr.mxu0 0.0
    %171 = vmatpush1.msra.mxu0 %v146
    %172 = vmatprep.subr.mxu0 0.0
    %173 = vmatpush1.msra.mxu0 %v147
    %174 = vmatprep.subr.mxu0 0.0
    %175 = vmatpush1.msra.mxu0 %v148
    %176 = vmatprep.subr.mxu0 0.0
    %177 = vmatpush1.msra.mxu0 %v149
    %178 = vmatprep.subr.mxu0 0.0
    %179 = vmatpush1.msra.mxu0 %v150
    %180 = vmatprep.subr.mxu0 0.0
    %181 = vmatpush1.msra.mxu0 %v151
    %182 = vmatprep.subr.mxu0 0.0
    %183 = vmatpush1.msra.mxu0 %v152
    %184 = vmatprep.subr.mxu0 0.0
    %185 = vmatpush1.msra.mxu0 %v153
    %186 = vmatprep.subr.mxu0 0.0
    %187 = vmatpush1.msra.mxu0 %v154
    %188 = vmatprep.subr.mxu0 0.0
    %189 = vmatpush1.msra.mxu0 %v155
    %190 = vmatprep.subr.mxu0 0.0
    %191 = vmatpush1.msra.mxu0 %v156
    %192 = vmatprep.subr.mxu0 0.0
    %193 = vmatpush1.msra.mxu0 %v157
    %194 = vmatprep.subr.mxu0 0.0
    %195 = vmatpush1.msra.mxu0 %v158
    %196 = vmatprep.subr.mxu0 0.0
    %197 = vmatpush1.msra.mxu0 %v159
    %198 = vmatprep.subr.mxu0 0.0
    %199 = vmatpush1.msra.mxu0 %v160
    %200 = vmatprep.subr.mxu0 0.0
    %201 = vmatpush1.msra.mxu0 0.0
    %202 = vmatprep.subr.mxu0 0.0
    %203 = vmatpush1.msra.mxu0 0.0
    %204 = vmatprep.subr.mxu0 0.0
    %205 = vmatpush1.msra.mxu0 0.0
    %206 = vmatprep.subr.mxu0 0.0
    %207 = vmatpush1.msra.mxu0 0.0
    %208 = vmatprep.subr.mxu0 0.0
    %209 = vmatpush1.msra.mxu0 0.0
    %210 = vmatprep.subr.mxu0 0.0
    %211 = vmatpush1.msra.mxu0 0.0
    %212 = vmatprep.subr.mxu0 0.0
    %213 = vmatpush1.msra.mxu0 0.0
    %214 = vmatprep.subr.mxu0 0.0
    %215 = vmatpush1.msra.mxu0 0.0
    %216 = vmatprep.subr.mxu0 0.0
    %217 = vmatpush1.msra.mxu0 0.0
    %218 = vmatprep.subr.mxu0 0.0
    %219 = vmatpush1.msra.mxu0 0.0
    %220 = vmatprep.subr.mxu0 0.0
    %221 = vmatpush1.msra.mxu0 0.0
    %222 = vmatprep.subr.mxu0 0.0
    %223 = vmatpush1.msra.mxu0 0.0
    %224 = vmatprep.subr.mxu0 0.0
    %225 = vmatpush1.msra.mxu0 0.0
    %226 = vmatprep.subr.mxu0 0.0
    %227 = vmatpush1.msra.mxu0 0.0
    %228 = vmatprep.subr.mxu0 0.0
    %229 = vmatpush1.msra.mxu0 0.0
    %230 = vmatprep.subr.mxu0 0.0
    %231 = vmatpush1.msra.mxu0 0.0
    %232 = vmatprep.mubr.f32.mxu0 0.0
    %233 = vmatmul.mubr.f32.gmra.mrb[0].mxu0 %v144
    %v234 = vpop.f32.mrb[0].mxu0
    %v235 = vadd.f32 %v166, %v234
    %v236 = vpop.f32.mrb[0].mxu0
    %237 = vdwg.mxu0
    %v238 = vxor.u32 %v235, 2147483648
    %v239 = vmul.f32 %v238, 1.442695
    %v240 = vpow.pop %v239
    %v241 = vadd.f32 %v240, 1.0
    %v242 = vrcp.pop %v241
    %v243 = vmul.f32 1.0, %v242
    %v244 = vmul.f32 %v243, 4.0
    %v245 = vadd.f32 %v244, 1.0
    %246 = vst [vmem:[#allocation8] sm:$0xff] %v245
    // Predicated region
    $region34: #{tpu_custom_call.1} parent=1 // pred_check
      _
    $region35: #{tpu_custom_call.1} parent=1 // pred_check_branch
      %248 = sbr.rel (0) target = $region37
    $region36: #{tpu_custom_call.1} parent=1 // pred_region
      %s250 = ssub.s32 128, 128
      %251 = vsyncadd [#allocation4], %s250
      %s253 = sshll.u32 [#allocation8], 4
      %s254 = int_to_ptr.vmem [resolvable:$true] %s253
      %256 = dma.vmem_to_hbm [thread:$0]  %s254, 128, %s5, [#allocation4]
    $region37: #{tpu_custom_call.1} parent=1 // pred_fallthru
      _
    // Predicated region
    $region38: #{tpu_custom_call.1} parent=1 // pred_check
      _
    $region39: #{tpu_custom_call.1} parent=1 // pred_check_branch
      %258 = sbr.rel (0) target = $region41
    $region40: #{tpu_custom_call.1} parent=1 // pred_region
      %259 = dma.done [#allocation4], 128
    $region41: #{tpu_custom_call.1} parent=1 // pred_fallthru
      _
    %260 = vsyncpa [#allocation3], 1
    %261 = vsyncpa [#allocation6], 1
    %262 = vsyncpa [#allocation4], 1

</llo_original>
